<compile_context>
chip_gen: v7x
topology: tpu7x:2x2x1
jax: 0.10.0
libtpu: 0.0.40
codegen_flags: <defaults>
</compile_context>

<pallas_src>
import jax
import jax.numpy as jnp
from jax.experimental import pallas as pl
from jax.experimental.pallas import tpu as pltpu

INPUT_DIM = 17
HIDDEN_DIMS = (256, 128, 64)
BN_EPS = 1e-5
TILE_B = 4096   # rows per grid step; multiple of 128. ~10-15 MB VMEM -> fits the
                # 32 MiB scoped limit on every generation incl. v7x (64 MiB/TC).
                # v5e/v6e (128 MiB VMEM) may go to 8192 with a larger vmem limit.


def _round_up(n, m):
    return ((n + m - 1) // m) * m


def _pick_tile(batch, tile_cap):
    """Pick a batch tile: multiple of 128, clamped for small batches, and split
    so medium/large batches give >= 2 grid steps (v7x megacore; the extra
    ~0.35 us step is harmless on 1-TC v5e/v6e)."""
    rounded = _round_up(batch, 128)
    if rounded <= 256:
        return rounded
    tile = min(tile_cap, rounded)
    if pl.cdiv(batch, tile) < 2:
        tile = min(tile_cap, _round_up(pl.cdiv(batch, 2), 128))
    return tile


def _mlp_kernel(x_ref,
                w1_ref, b1_ref, w2_ref, b2_ref, w3_ref, b3_ref,
                w4_ref, c4_ref,
                o_ref):
    """One batch tile: 3 fused Linear+BN+ReLU layers + lane-dense output head."""
    x = x_ref[...]
    if x.dtype != jnp.bfloat16:
        x = x.astype(jnp.bfloat16)        # no-op if producer already emits bf16

    # Layer 1 (Dropout = identity in eval; BN folded into w/b at prep time).
    # Bias-add + ReLU in f32 (safe on v5e); single bf16 materialization per layer.
    h = jnp.dot(x, w1_ref[...], preferred_element_type=jnp.float32)
    h = jnp.maximum(h + b1_ref[...], 0.0).astype(jnp.bfloat16)
    # Layer 2
    h = jnp.dot(h, w2_ref[...], preferred_element_type=jnp.float32)
    h = jnp.maximum(h + b2_ref[...], 0.0).astype(jnp.bfloat16)
    # Layer 3
    h = jnp.dot(h, w3_ref[...], preferred_element_type=jnp.float32)
    h = jnp.maximum(h + b3_ref[...], 0.0).astype(jnp.bfloat16)   # (TILE_B, 64)

    # Head: contract the 64-feature axis of both operands (q @ k^T pattern, no
    # explicit transpose of h) -> batch lands on the lane axis: (8, TILE_B).
    z = jax.lax.dot_general(
        w4_ref[...], h,
        dimension_numbers=(((1,), (1,)), ((), ())),
        preferred_element_type=jnp.float32)

    # Epilogue + store on row 0 only (rows 1..7 are identical copies).
    z0 = z[0:1, :] + c4_ref[...]                   # c4 = bias4 + 3.5 (folded)
    # widths = clamp(softplus(z0) + 25, 5, 100)   (numerically stable softplus)
    sp = jnp.maximum(z0, 0.0) + jnp.log1p(jnp.exp(-jnp.abs(z0)))
    o_ref[...] = jnp.clip(sp + 25.0, 5.0, 100.0)   # (1, TILE_B) lane-dense


def regression_scoring_forward(x, params, *, tile_b=TILE_B):
    """x: [batch, 17] float32 (or bfloat16), params from prepare_params().
    Returns [batch, 1] float32 interval widths."""
    batch = x.shape[0]
    tile = _pick_tile(batch, tile_b)
    assert tile % 128 == 0
    num_tiles = pl.cdiv(batch, tile)
    padded_out = num_tiles * tile   # lane-dense, full output blocks; tail sliced off

    w1, b1, w2, b2, w3, b3, w4, c4 = params

    def resident(arr):   # full-array block, constant index map -> DMA'd once
        return pl.BlockSpec(arr.shape, lambda i: (0, 0))

    out = pl.pallas_call(
        _mlp_kernel,
        out_shape=jax.ShapeDtypeStruct((1, padded_out), jnp.float32),
        grid=(num_tiles,),
        in_specs=[
            # x batch-tiled; last block may be partial -> OOB rows are garbage
            # but row-independent and discarded (no wrapper-side pad pass).
            pl.BlockSpec((tile, INPUT_DIM), lambda i: (i, 0)),
            resident(w1), resident(b1),
            resident(w2), resident(b2),
            resident(w3), resident(b3),
            resident(w4), resident(c4),
        ],
        out_specs=pl.BlockSpec((1, tile), lambda i: (0, i)),      # lane-dense row
        compiler_params=pltpu.CompilerParams(
            dimension_semantics=("parallel",),
            vmem_limit_bytes=32 * 1024 * 1024,
        ),
    )(x, w1, b1, w2, b2, w3, b3, w4, c4)

    return out[0, :batch][:, None]


def make_raw_params(key):
    """'Trained-looking' params with the PyTorch module's shapes/semantics.

    Linear weights use kaiming_normal_(fan_out, relu) like _initialize_weights
    (std = sqrt(2 / out_features)); biases and BatchNorm running stats are given
    small non-trivial values so the eval-mode BN fold is actually exercised.
    """
    dims = (INPUT_DIM,) + HIDDEN_DIMS
    keys = iter(jax.random.split(key, 32))
    raw = {}
    for l, (d_in, d_out) in enumerate(zip(dims[:-1], dims[1:]), start=1):
        std = (2.0 / d_out) ** 0.5
        raw[f"w{l}"] = std * jax.random.normal(next(keys), (d_in, d_out), jnp.float32)
        raw[f"b{l}"] = 0.1 * jax.random.normal(next(keys), (d_out,), jnp.float32)
        raw[f"gamma{l}"] = 1.0 + 0.1 * jax.random.normal(next(keys), (d_out,), jnp.float32)
        raw[f"beta{l}"] = 0.1 * jax.random.normal(next(keys), (d_out,), jnp.float32)
        raw[f"mean{l}"] = 0.1 * jax.random.normal(next(keys), (d_out,), jnp.float32)
        raw[f"var{l}"] = jax.random.uniform(next(keys), (d_out,), jnp.float32, 0.5, 1.5)
    raw["w4"] = (2.0 ** 0.5) * jax.random.normal(next(keys), (HIDDEN_DIMS[-1], 1), jnp.float32)
    raw["b4"] = 0.1 * jax.random.normal(next(keys), (), jnp.float32)
    return raw


def prepare_params(raw):
    """Fold eval-mode BatchNorm + linear bias into W'/b' and cast matmul
    operands to bf16 (wrapper-side, once)."""
    params = []
    for l in (1, 2, 3):
        s = raw[f"gamma{l}"] / jnp.sqrt(raw[f"var{l}"] + BN_EPS)
        w_folded = raw[f"w{l}"] * s[None, :]
        b_folded = raw[f"b{l}"] * s + raw[f"beta{l}"] - raw[f"mean{l}"] * s
        params.append(w_folded.astype(jnp.bfloat16))
        params.append(b_folded.reshape(1, -1).astype(jnp.float32))
    # Head: replicate the (64,) weight row across 8 sublanes so the shared-axis
    # contraction yields a lane-dense (8, TILE_B) tile; fold bias + 3.5 offset.
    w4_row = raw["w4"].reshape(1, HIDDEN_DIMS[-1])
    params.append(jnp.tile(w4_row, (8, 1)).astype(jnp.bfloat16))
    params.append((raw["b4"] + 3.5).reshape(1, 1).astype(jnp.float32))
    return tuple(params)


def _reference_forward_f32(x, raw):
    """Pure-JAX f32 reference with explicit eval-mode BatchNorm (semantics check)."""
    h = x
    for l in (1, 2, 3):
        u = h @ raw[f"w{l}"] + raw[f"b{l}"]
        u = (u - raw[f"mean{l}"]) / jnp.sqrt(raw[f"var{l}"] + BN_EPS)
        u = u * raw[f"gamma{l}"] + raw[f"beta{l}"]
        h = jnp.maximum(u, 0.0)
    z = h @ raw["w4"] + raw["b4"]
    return jnp.clip(jax.nn.softplus(z + 3.5) + 25.0, 5.0, 100.0)


def _reference_forward_bf16(x, params):
    """Pure-JAX reference mirroring the kernel's bf16-matmul / f32-accum numerics."""
    w1, b1, w2, b2, w3, b3, w4, c4 = params
    h = x.astype(jnp.bfloat16)
    h = jnp.maximum(jnp.dot(h, w1, preferred_element_type=jnp.float32) + b1,
                    0.0).astype(jnp.bfloat16)
    h = jnp.maximum(jnp.dot(h, w2, preferred_element_type=jnp.float32) + b2,
                    0.0).astype(jnp.bfloat16)
    h = jnp.maximum(jnp.dot(h, w3, preferred_element_type=jnp.float32) + b3,
                    0.0).astype(jnp.bfloat16)
    z = jnp.dot(h, w4[0:1].T, preferred_element_type=jnp.float32) + c4
    sp = jnp.maximum(z, 0.0) + jnp.log1p(jnp.exp(-jnp.abs(z)))
    return jnp.clip(sp + 25.0, 5.0, 100.0)


if __name__ == "__main__":
    key = jax.random.PRNGKey(0)
    k_param, k_x1, k_x2 = jax.random.split(key, 3)

    raw = make_raw_params(k_param)
    params = prepare_params(raw)

    # --- small-batch check (single partial tile; exercises the no-pad path) ---
    batch = 8
    x = jax.random.normal(k_x1, (batch, INPUT_DIM), dtype=jnp.float32)
    widths = jax.block_until_ready(regression_scoring_forward(x, params))
    assert widths.shape == (batch, 1)

    ref_bf16 = _reference_forward_bf16(x, params)
    assert jnp.allclose(widths, ref_bf16, atol=2e-2, rtol=2e-3), (
        float(jnp.max(jnp.abs(widths - ref_bf16))))
    ref_f32 = _reference_forward_f32(x, raw)
    assert jnp.allclose(widths, ref_f32, atol=0.5, rtol=0.0), (
        float(jnp.max(jnp.abs(widths - ref_f32))))

    # --- non-multiple batch, multi-tile check (partial last block, 2 grid steps) ---
    batch2 = 300
    x2 = jax.random.normal(k_x2, (batch2, INPUT_DIM), dtype=jnp.float32)
    widths2 = jax.block_until_ready(regression_scoring_forward(x2, params))
    assert widths2.shape == (batch2, 1)
    ref2 = _reference_forward_bf16(x2, params)
    assert jnp.allclose(widths2, ref2, atol=2e-2, rtol=2e-3), (
        float(jnp.max(jnp.abs(widths2 - ref2))))
    assert bool(jnp.all(jnp.isfinite(widths2)))

    print("KERNEL_OK")
</pallas_src>

<mosaic_0001>
module attributes {stable_mosaic.version = 11 : i64} {
  func.func @_mlp_kernel(%arg0: i32, %arg1: memref<128x17xf32, #tpu.memory_space<vmem>>, %arg2: memref<17x256xbf16, #tpu.memory_space<vmem>>, %arg3: memref<1x256xf32, #tpu.memory_space<vmem>>, %arg4: memref<256x128xbf16, #tpu.memory_space<vmem>>, %arg5: memref<1x128xf32, #tpu.memory_space<vmem>>, %arg6: memref<128x64xbf16, #tpu.memory_space<vmem>>, %arg7: memref<1x64xf32, #tpu.memory_space<vmem>>, %arg8: memref<8x64xbf16, #tpu.memory_space<vmem>>, %arg9: memref<1x1xf32, #tpu.memory_space<vmem>>, %arg10: memref<1x128xf32, #tpu.memory_space<vmem>>) attributes {dimension_semantics = [#tpu.dimension_semantics<parallel>], iteration_bounds = array<i64: 1>, scalar_prefetch = 0 : i64, scratch_operands = 0 : i64, tpu.core_type = #tpu.core_type<tc>, window_params = [{transform_indices = @transform_0, window_bounds = array<i64: 128, 17>}, {pipeline_mode = #tpu.pipeline_mode<synchronous>, transform_indices = @transform_1, window_bounds = array<i64: 17, 256>}, {pipeline_mode = #tpu.pipeline_mode<synchronous>, transform_indices = @transform_2, window_bounds = array<i64: 1, 256>}, {pipeline_mode = #tpu.pipeline_mode<synchronous>, transform_indices = @transform_3, window_bounds = array<i64: 256, 128>}, {pipeline_mode = #tpu.pipeline_mode<synchronous>, transform_indices = @transform_4, window_bounds = array<i64: 1, 128>}, {pipeline_mode = #tpu.pipeline_mode<synchronous>, transform_indices = @transform_5, window_bounds = array<i64: 128, 64>}, {pipeline_mode = #tpu.pipeline_mode<synchronous>, transform_indices = @transform_6, window_bounds = array<i64: 1, 64>}, {pipeline_mode = #tpu.pipeline_mode<synchronous>, transform_indices = @transform_7, window_bounds = array<i64: 8, 64>}, {pipeline_mode = #tpu.pipeline_mode<synchronous>, transform_indices = @transform_8, window_bounds = array<i64: 1, 1>}, {transform_indices = @transform_9, window_bounds = array<i64: 1, 128>}]} {
    %c0 = arith.constant 0 : index
    %c0_0 = arith.constant 0 : index
    %0 = vector.load %arg1[%c0, %c0_0] : memref<128x17xf32, #tpu.memory_space<vmem>>, vector<128x17xf32>
    %1 = arith.truncf %0 : vector<128x17xf32> to vector<128x17xbf16>
    %c0_1 = arith.constant 0 : index
    %c0_2 = arith.constant 0 : index
    %2 = vector.load %arg2[%c0_1, %c0_2] : memref<17x256xbf16, #tpu.memory_space<vmem>>, vector<17x256xbf16>
    %cst = arith.constant dense<0.000000e+00> : vector<128x256xf32>
    %3 = tpu.matmul %1, %2, %cst {dimension_numbers = #tpu.dot_dimension_numbers<[1], [0], [0], [1], [0, 0, 1, 1], [], []>} : vector<128x17xbf16>, vector<17x256xbf16>, vector<128x256xf32> -> vector<128x256xf32>
    %c0_3 = arith.constant 0 : index
    %c0_4 = arith.constant 0 : index
    %4 = vector.load %arg3[%c0_3, %c0_4] : memref<1x256xf32, #tpu.memory_space<vmem>>, vector<1x256xf32>
    %5 = vector.broadcast %4 : vector<1x256xf32> to vector<128x256xf32>
    %6 = arith.addf %3, %5 : vector<128x256xf32>
    %cst_5 = arith.constant 0.000000e+00 : f32
    %7 = vector.broadcast %cst_5 : f32 to vector<128x256xf32>
    %8 = arith.maximumf %6, %7 : vector<128x256xf32>
    %9 = arith.truncf %8 : vector<128x256xf32> to vector<128x256xbf16>
    %c0_6 = arith.constant 0 : index
    %c0_7 = arith.constant 0 : index
    %10 = vector.load %arg4[%c0_6, %c0_7] : memref<256x128xbf16, #tpu.memory_space<vmem>>, vector<256x128xbf16>
    %cst_8 = arith.constant dense<0.000000e+00> : vector<128x128xf32>
    %11 = tpu.matmul %9, %10, %cst_8 {dimension_numbers = #tpu.dot_dimension_numbers<[1], [0], [0], [1], [0, 0, 1, 1], [], []>} : vector<128x256xbf16>, vector<256x128xbf16>, vector<128x128xf32> -> vector<128x128xf32>
    %c0_9 = arith.constant 0 : index
    %c0_10 = arith.constant 0 : index
    %12 = vector.load %arg5[%c0_9, %c0_10] : memref<1x128xf32, #tpu.memory_space<vmem>>, vector<1x128xf32>
    %13 = vector.broadcast %12 : vector<1x128xf32> to vector<128x128xf32>
    %14 = arith.addf %11, %13 : vector<128x128xf32>
    %cst_11 = arith.constant 0.000000e+00 : f32
    %15 = vector.broadcast %cst_11 : f32 to vector<128x128xf32>
    %16 = arith.maximumf %14, %15 : vector<128x128xf32>
    %17 = arith.truncf %16 : vector<128x128xf32> to vector<128x128xbf16>
    %c0_12 = arith.constant 0 : index
    %c0_13 = arith.constant 0 : index
    %18 = vector.load %arg6[%c0_12, %c0_13] : memref<128x64xbf16, #tpu.memory_space<vmem>>, vector<128x64xbf16>
    %cst_14 = arith.constant dense<0.000000e+00> : vector<128x64xf32>
    %19 = tpu.matmul %17, %18, %cst_14 {dimension_numbers = #tpu.dot_dimension_numbers<[1], [0], [0], [1], [0, 0, 1, 1], [], []>} : vector<128x128xbf16>, vector<128x64xbf16>, vector<128x64xf32> -> vector<128x64xf32>
    %c0_15 = arith.constant 0 : index
    %c0_16 = arith.constant 0 : index
    %20 = vector.load %arg7[%c0_15, %c0_16] : memref<1x64xf32, #tpu.memory_space<vmem>>, vector<1x64xf32>
    %21 = vector.broadcast %20 : vector<1x64xf32> to vector<128x64xf32>
    %22 = arith.addf %19, %21 : vector<128x64xf32>
    %cst_17 = arith.constant 0.000000e+00 : f32
    %23 = vector.broadcast %cst_17 : f32 to vector<128x64xf32>
    %24 = arith.maximumf %22, %23 : vector<128x64xf32>
    %25 = arith.truncf %24 : vector<128x64xf32> to vector<128x64xbf16>
    %c0_18 = arith.constant 0 : index
    %c0_19 = arith.constant 0 : index
    %26 = vector.load %arg8[%c0_18, %c0_19] : memref<8x64xbf16, #tpu.memory_space<vmem>>, vector<8x64xbf16>
    %cst_20 = arith.constant dense<0.000000e+00> : vector<8x128xf32>
    %27 = tpu.matmul %26, %25, %cst_20 {dimension_numbers = #tpu.dot_dimension_numbers<[1], [1], [0], [0], [0, 0, 1, 0], [], []>} : vector<8x64xbf16>, vector<128x64xbf16>, vector<8x128xf32> -> vector<8x128xf32>
    %28 = vector.extract_strided_slice %27 {offsets = [0, 0], sizes = [1, 128], strides = [1, 1]} : vector<8x128xf32> to vector<1x128xf32>
    %c0_21 = arith.constant 0 : index
    %c0_22 = arith.constant 0 : index
    %29 = vector.load %arg9[%c0_21, %c0_22] : memref<1x1xf32, #tpu.memory_space<vmem>>, vector<1x1xf32>
    %30 = vector.broadcast %29 : vector<1x1xf32> to vector<1x128xf32>
    %31 = arith.addf %28, %30 : vector<1x128xf32>
    %cst_23 = arith.constant 0.000000e+00 : f32
    %32 = vector.broadcast %cst_23 : f32 to vector<1x128xf32>
    %33 = arith.maximumf %31, %32 : vector<1x128xf32>
    %34 = math.absf %31 : vector<1x128xf32>
    %cst_24 = arith.constant 0.000000e+00 : f32
    %35 = vector.broadcast %cst_24 : f32 to vector<1x128xf32>
    %36 = arith.subf %35, %34 : vector<1x128xf32>
    %37 = math.exp %36 : vector<1x128xf32>
    %38 = math.log1p %37 : vector<1x128xf32>
    %39 = arith.addf %33, %38 : vector<1x128xf32>
    %cst_25 = arith.constant 2.500000e+01 : f32
    %40 = vector.broadcast %cst_25 : f32 to vector<1x128xf32>
    %41 = arith.addf %39, %40 : vector<1x128xf32>
    %cst_26 = arith.constant 5.000000e+00 : f32
    %cst_27 = arith.constant 1.000000e+02 : f32
    %42 = vector.broadcast %cst_26 : f32 to vector<1x128xf32>
    %43 = arith.maximumf %42, %41 : vector<1x128xf32>
    %44 = vector.broadcast %cst_27 : f32 to vector<1x128xf32>
    %45 = arith.minimumf %44, %43 : vector<1x128xf32>
    %c0_28 = arith.constant 0 : index
    %c0_29 = arith.constant 0 : index
    %46 = vector.load %arg10[%c0_28, %c0_29] : memref<1x128xf32, #tpu.memory_space<vmem>>, vector<1x128xf32>
    tpu.vector_store %arg10[%c0_28, %c0_29], %45 {strides = array<i32>} : memref<1x128xf32, #tpu.memory_space<vmem>>, vector<1x128xf32>,
    return
  }
  func.func @transform_0(%arg0: i32) -> (i32, i32) {
    %c0_i32 = arith.constant 0 : i32
    %c0_i32_0 = arith.constant 0 : i32
    return %arg0, %c0_i32 : i32, i32
  }
  func.func @transform_1(%arg0: i32) -> (i32, i32) {
    %c0_i32 = arith.constant 0 : i32
    %c0_i32_0 = arith.constant 0 : i32
    %c0_i32_1 = arith.constant 0 : i32
    return %c0_i32, %c0_i32_0 : i32, i32
  }
  func.func @transform_2(%arg0: i32) -> (i32, i32) {
    %c0_i32 = arith.constant 0 : i32
    %c0_i32_0 = arith.constant 0 : i32
    %c0_i32_1 = arith.constant 0 : i32
    return %c0_i32, %c0_i32_0 : i32, i32
  }
  func.func @transform_3(%arg0: i32) -> (i32, i32) {
    %c0_i32 = arith.constant 0 : i32
    %c0_i32_0 = arith.constant 0 : i32
    %c0_i32_1 = arith.constant 0 : i32
    return %c0_i32, %c0_i32_0 : i32, i32
  }
  func.func @transform_4(%arg0: i32) -> (i32, i32) {
    %c0_i32 = arith.constant 0 : i32
    %c0_i32_0 = arith.constant 0 : i32
    %c0_i32_1 = arith.constant 0 : i32
    return %c0_i32, %c0_i32_0 : i32, i32
  }
  func.func @transform_5(%arg0: i32) -> (i32, i32) {
    %c0_i32 = arith.constant 0 : i32
    %c0_i32_0 = arith.constant 0 : i32
    %c0_i32_1 = arith.constant 0 : i32
    return %c0_i32, %c0_i32_0 : i32, i32
  }
  func.func @transform_6(%arg0: i32) -> (i32, i32) {
    %c0_i32 = arith.constant 0 : i32
    %c0_i32_0 = arith.constant 0 : i32
    %c0_i32_1 = arith.constant 0 : i32
    return %c0_i32, %c0_i32_0 : i32, i32
  }
  func.func @transform_7(%arg0: i32) -> (i32, i32) {
    %c0_i32 = arith.constant 0 : i32
    %c0_i32_0 = arith.constant 0 : i32
    %c0_i32_1 = arith.constant 0 : i32
    return %c0_i32, %c0_i32_0 : i32, i32
  }
  func.func @transform_8(%arg0: i32) -> (i32, i32) {
    %c0_i32 = arith.constant 0 : i32
    %c0_i32_0 = arith.constant 0 : i32
    %c0_i32_1 = arith.constant 0 : i32
    return %c0_i32, %c0_i32_0 : i32, i32
  }
  func.func @transform_9(%arg0: i32) -> (i32, i32) {
    %c0_i32 = arith.constant 0 : i32
    %c0_i32_0 = arith.constant 0 : i32
    return %c0_i32, %arg0 : i32, i32
  }
}

</mosaic_0001>

<llo_original>
// kernel: tpu_custom_call.1
$region0: #{tpu_custom_call.1}
  #allocation0 [shape = 'u32[]', space=smem, size = 0x4, offset = 0x4, fixed_abs, tag = 'smem constant byte address 0x4 - core index']
  #allocation1 [shape = 'u32[144,128]{1,0:T(1,128)}', space=vmem, size = 0x12000, scoped, tag = 'internal scratch']
  #allocation2 [shape = 'f32[1,1]{1,0:T(1,128)S(1)}', space=vmem, size = 0x200, scoped, tag = 'scoped memory for tpu_custom_call.1']
  %s0 = inlined_call_operand.vmem [shape: f32[8,17], index: 0, kind: input, shape index: {}]
  %s1 = inlined_call_operand.vmem [shape: bf16[17,256], index: 1, kind: input, shape index: {}]
  %s2 = inlined_call_operand.vmem [shape: f32[1,256], index: 2, kind: input, shape index: {}]
  %s3 = inlined_call_operand.hbm [shape: bf16[256,128], index: 3, kind: input, shape index: {}]
  %s4 = inlined_call_operand.vmem [shape: f32[1,128], index: 4, kind: input, shape index: {}]
  %s5 = inlined_call_operand.vmem [shape: bf16[128,64], index: 5, kind: input, shape index: {}]
  %s6 = inlined_call_operand.vmem [shape: f32[1,64], index: 6, kind: input, shape index: {}]
  %s7 = inlined_call_operand.vmem [shape: bf16[8,64], index: 7, kind: input, shape index: {}]
  %s8 = inlined_call_operand.<no memory space> [shape: f32[1,1], index: 8, kind: input, shape index: {}]
  %s9 = inlined_call_operand.hbm [shape: f32[1,128], index: 9, kind: output, shape index: {}]
  %s10 = sld [smem:[#allocation0]]
  $region50: #{tpu_custom_call.1} parent=0
    _
  %s12 = ssub.s32 1, %s10
  %s13 = scalar_select 0, %s12, %s10
  %v14 = vstv %s8
  %15 = vst [vmem:[#allocation2] sm:$0x1] %v14
  $region1: #{tpu_custom_call.1} parent=0
    #allocation3 [shape = 'u8[65536]{0}', space=vmem, size = 0x10000, scoped, tag = 'input window, operand 3, single buffered']
    #allocation4 [shape = 's32[1]{0}', space=sflag, size = 0x4, scoped, tag = 'scoped memory for tpu_custom_call.1']
    #allocation5 [shape = 's32[1]{0}', space=sflag, size = 0x4, scoped, tag = 'scoped memory for tpu_custom_call.1']
    #allocation6 [shape = 'u8[512]{0}', space=vmem, size = 0x400, scoped, tag = 'output window, operand 0, single buffered']
    %16 = vsyncpa [#allocation4], 0
    %17 = vsyncpa [#allocation5], 0
    // Predicated region
    $region2: #{tpu_custom_call.1} parent=1 // pred_check
      _
    $region3: #{tpu_custom_call.1} parent=1 // pred_check_branch
      %19 = sbr.rel (0) target = $region5
    $region4: #{tpu_custom_call.1} parent=1 // pred_region
      _
    $region5: #{tpu_custom_call.1} parent=1 // pred_fallthru
      _
    // Predicated region
    $region6: #{tpu_custom_call.1} parent=1 // pred_check
      _
    $region7: #{tpu_custom_call.1} parent=1 // pred_check_branch
      %21 = sbr.rel (0) target = $region9
    $region8: #{tpu_custom_call.1} parent=1 // pred_region
      _
    $region9: #{tpu_custom_call.1} parent=1 // pred_fallthru
      _
    // Predicated region
    $region10: #{tpu_custom_call.1} parent=1 // pred_check
      _
    $region11: #{tpu_custom_call.1} parent=1 // pred_check_branch
      %23 = sbr.rel (0) target = $region13
    $region12: #{tpu_custom_call.1} parent=1 // pred_region
      _
    $region13: #{tpu_custom_call.1} parent=1 // pred_fallthru
      _
    // Predicated region
    $region14: #{tpu_custom_call.1} parent=1 // pred_check
      _
    $region15: #{tpu_custom_call.1} parent=1 // pred_check_branch
      %25 = sbr.rel (0) target = $region17
    $region16: #{tpu_custom_call.1} parent=1 // pred_region
      %s27 = ssub.s32 2048, 2048
      %28 = vsyncadd [#allocation4], %s27
      %s29 = sshll.u32 [#allocation3], 4
      %s30 = int_to_ptr.vmem [resolvable:$true] %s29
      %35 = dma.hbm_to_vmem [thread:$0]  %s3, 2048, %s30, [#allocation4], 64, 64, 4
    $region17: #{tpu_custom_call.1} parent=1 // pred_fallthru
      _
    // Predicated region
    $region18: #{tpu_custom_call.1} parent=1 // pred_check
      _
    $region19: #{tpu_custom_call.1} parent=1 // pred_check_branch
      %37 = sbr.rel (0) target = $region21
    $region20: #{tpu_custom_call.1} parent=1 // pred_region
      _
    $region21: #{tpu_custom_call.1} parent=1 // pred_fallthru
      _
    // Predicated region
    $region22: #{tpu_custom_call.1} parent=1 // pred_check
      _
    $region23: #{tpu_custom_call.1} parent=1 // pred_check_branch
      %39 = sbr.rel (0) target = $region25
    $region24: #{tpu_custom_call.1} parent=1 // pred_region
      _
    $region25: #{tpu_custom_call.1} parent=1 // pred_fallthru
      _
    // Predicated region
    $region26: #{tpu_custom_call.1} parent=1 // pred_check
      _
    $region27: #{tpu_custom_call.1} parent=1 // pred_check_branch
      %41 = sbr.rel (0) target = $region29
    $region28: #{tpu_custom_call.1} parent=1 // pred_region
      _
    $region29: #{tpu_custom_call.1} parent=1 // pred_fallthru
      _
    // Predicated region
    $region30: #{tpu_custom_call.1} parent=1 // pred_check
      _
    $region31: #{tpu_custom_call.1} parent=1 // pred_check_branch
      %43 = sbr.rel (0) target = $region33
    $region32: #{tpu_custom_call.1} parent=1 // pred_region
      _
    $region33: #{tpu_custom_call.1} parent=1 // pred_fallthru
      _
    // Predicated region
    $region34: #{tpu_custom_call.1} parent=1 // pred_check
      _
    $region35: #{tpu_custom_call.1} parent=1 // pred_check_branch
      %45 = sbr.rel (0) target = $region37
    $region36: #{tpu_custom_call.1} parent=1 // pred_region
      _
    $region37: #{tpu_custom_call.1} parent=1 // pred_fallthru
      _
    // Predicated region
    $region38: #{tpu_custom_call.1} parent=1 // pred_check
      _
    $region39: #{tpu_custom_call.1} parent=1 // pred_check_branch
      %47 = sbr.rel (0) target = $region41
    $region40: #{tpu_custom_call.1} parent=1 // pred_region
      %48 = dma.done [#allocation4], 2048
    $region41: #{tpu_custom_call.1} parent=1 // pred_fallthru
      _
    %v50 = vld [vmem:[%s0] sm:$0xff]
    %v51 = vld [vmem:[%s0 + $0x8] sm:$0xff]
    %v52 = vld [vmem:[%s0 + $0x10] sm:$0xff]
    %v53 = vld [vmem:[%s0 + $0x18] sm:$0xff]
    %v54 = vld [vmem:[%s0 + $0x20] sm:$0xff]
    %v55 = vld [vmem:[%s0 + $0x28] sm:$0xff]
    %v56 = vld [vmem:[%s0 + $0x30] sm:$0xff]
    %v57 = vld [vmem:[%s0 + $0x38] sm:$0xff]
    %v58 = vld [vmem:[%s0 + $0x40] sm:$0xff]
    %v59 = vld [vmem:[%s0 + $0x48] sm:$0xff]
    %v60 = vld [vmem:[%s0 + $0x50] sm:$0xff]
    %v61 = vld [vmem:[%s0 + $0x58] sm:$0xff]
    %v62 = vld [vmem:[%s0 + $0x60] sm:$0xff]
    %v63 = vld [vmem:[%s0 + $0x68] sm:$0xff]
    %v64 = vld [vmem:[%s0 + $0x70] sm:$0xff]
    %v65 = vld [vmem:[%s0 + $0x78] sm:$0xff]
    %v66 = vpack.c.bf16 %v51, %v50
    %v67 = vpack.c.bf16 %v53, %v52
    %v68 = vpack.c.bf16 %v55, %v54
    %v69 = vpack.c.bf16 %v57, %v56
    %v70 = vpack.c.bf16 %v59, %v58
    %v71 = vpack.c.bf16 %v61, %v60
    %v72 = vpack.c.bf16 %v63, %v62
    %v73 = vpack.c.bf16 %v65, %v64
    %v74 = vld [vmem:[%s1] sm:$0xff]
    %v75 = vld [vmem:[%s1 + $0x8] sm:$0xff]
    %v76 = vld [vmem:[%s1 + $0x10] sm:$0x11]
    %v77 = vld [vmem:[%s2] sm:$0x3]
    %v79 = vlaneseq
    %v80 = vshrl.u32 %v79, 7
    %v81 = vsub.s32 0, %v80
    %v82 = vrot.slane %v77, %v81
    %v83 = vlaneseq
    %v84 = vshrl.u32 %v83, 7
    %v85 = vsub.s32 1, %v84
    %v86 = vrot.slane %v77, %v85
    %v92 = vunpack.c.l.b16 %v74
    %v93 = vunpack.c.h.b16 %v74
    %v94 = vunpack.c.l.b16 %v75
    %v95 = vunpack.c.h.b16 %v75
    %v96 = vunpack.c.l.b16 %v76
    %v97 = vunpack.c.h.b16 %v76
    %v98 = vpack.c.b16 %v94, %v92
    %v99 = vpack.c.b16 %v95, %v93
    %v100 = vpack.c.b16 %v96, %v96
    %v101 = vpack.c.b16 %v97, %v97
    %vm104 = vcmask 138240
    %v106 = vsel %vm104, %v66, 0
    %v109 = vsel %vm104, %v67, 0
    %v112 = vsel %vm104, %v68, 0
    %v115 = vsel %vm104, %v69, 0
    %v118 = vsel %vm104, %v70, 0
    %v121 = vsel %vm104, %v71, 0
    %v124 = vsel %vm104, %v72, 0
    %v127 = vsel %vm104, %v73, 0
    %vm129 = vcmask 1040384
    %v130 = vsel 0, 4294967295, 65535
    %v131 = vsel %vm129, %v130, 0
    %v133 = vand.u32 %v100, %v131
    %v136 = vand.u32 %v101, %v131
    %138 = vmatprep.subr.bf16.mxu0 %v99
    %139 = vmatpush1.bf16.msra.mxu0 %v98
    %140 = vmatprep.subr.bf16.mxu0 %v136
    %141 = vmatpush1.bf16.msra.mxu0 %v133
    %142 = vmatprep.subr.bf16.mxu0 0
    %143 = vmatpush1.bf16.msra.mxu0 0
    %144 = vmatprep.subr.bf16.mxu0 0
    %145 = vmatpush1.bf16.msra.mxu0 0
    %146 = vmatprep.subr.bf16.mxu0 0
    %147 = vmatpush1.bf16.msra.mxu0 0
    %148 = vmatprep.subr.bf16.mxu0 0
    %149 = vmatpush1.bf16.msra.mxu0 0
    %150 = vmatprep.subr.bf16.mxu0 0
    %151 = vmatpush1.bf16.msra.mxu0 0
    %152 = vmatprep.subr.bf16.mxu0 0
    %153 = vmatpush1.bf16.msra.mxu0 0
    %154 = vmatprep.subr.bf16.mxu0 0
    %155 = vmatpush1.bf16.msra.mxu0 0
    %156 = vmatprep.subr.bf16.mxu0 0
    %157 = vmatpush1.bf16.msra.mxu0 0
    %158 = vmatprep.subr.bf16.mxu0 0
    %159 = vmatpush1.bf16.msra.mxu0 0
    %160 = vmatprep.subr.bf16.mxu0 0
    %161 = vmatpush1.bf16.msra.mxu0 0
    %162 = vmatprep.subr.bf16.mxu0 0
    %163 = vmatpush1.bf16.msra.mxu0 0
    %164 = vmatprep.subr.bf16.mxu0 0
    %165 = vmatpush1.bf16.msra.mxu0 0
    %166 = vmatprep.subr.bf16.mxu0 0
    %167 = vmatpush1.bf16.msra.mxu0 0
    %168 = vmatprep.subr.bf16.mxu0 0
    %169 = vmatpush1.bf16.msra.mxu0 0
    %170 = vmatprep.mubr.bf16.mxu0 0
    %171 = vmatmul.mubr.bf16.gmra.mrb[0].mxu0 %v106
    %v172 = vpop.f32.mrb[0].mxu0
    %v173 = vadd.f32 %v82, %v172
    %v174 = vpop.f32.mrb[0].mxu0
    %v175 = vadd.f32 %v86, %v174
    %v176 = vpop.f32.mrb[0].mxu0
    %v177 = vadd.f32 %v82, %v176
    %v178 = vpop.f32.mrb[0].mxu0
    %v179 = vadd.f32 %v86, %v178
    %180 = vmatprep.mubr.bf16.mxu0 0
    %181 = vmatmul.mubr.bf16.gmra.mrb[0].mxu0 %v109
    %v182 = vpop.f32.mrb[0].mxu0
    %v183 = vadd.f32 %v82, %v182
    %v184 = vpop.f32.mrb[0].mxu0
    %v185 = vadd.f32 %v86, %v184
    %v186 = vpop.f32.mrb[0].mxu0
    %v187 = vadd.f32 %v82, %v186
    %v188 = vpop.f32.mrb[0].mxu0
    %v189 = vadd.f32 %v86, %v188
    %190 = vmatprep.mubr.bf16.mxu0 0
    %191 = vmatmul.mubr.bf16.gmra.mrb[0].mxu0 %v112
    %v192 = vpop.f32.mrb[0].mxu0
    %v193 = vadd.f32 %v82, %v192
    %v194 = vpop.f32.mrb[0].mxu0
    %v195 = vadd.f32 %v86, %v194
    %v196 = vpop.f32.mrb[0].mxu0
    %v197 = vadd.f32 %v82, %v196
    %v198 = vpop.f32.mrb[0].mxu0
    %v199 = vadd.f32 %v86, %v198
    %200 = vmatprep.mubr.bf16.mxu0 0
    %201 = vmatmul.mubr.bf16.gmra.mrb[0].mxu0 %v115
    %v202 = vpop.f32.mrb[0].mxu0
    %v203 = vadd.f32 %v82, %v202
    %v204 = vpop.f32.mrb[0].mxu0
    %v205 = vadd.f32 %v86, %v204
    %v206 = vpop.f32.mrb[0].mxu0
    %v207 = vadd.f32 %v82, %v206
    %v208 = vpop.f32.mrb[0].mxu0
    %v209 = vadd.f32 %v86, %v208
    %210 = vmatprep.mubr.bf16.mxu0 0
    %211 = vmatmul.mubr.bf16.gmra.mrb[0].mxu0 %v118
    %v212 = vpop.f32.mrb[0].mxu0
    %v213 = vadd.f32 %v82, %v212
    %v214 = vpop.f32.mrb[0].mxu0
    %v215 = vadd.f32 %v86, %v214
    %v216 = vpop.f32.mrb[0].mxu0
    %v217 = vadd.f32 %v82, %v216
    %v218 = vpop.f32.mrb[0].mxu0
    %v219 = vadd.f32 %v86, %v218
    %220 = vmatprep.mubr.bf16.mxu0 0
    %221 = vmatmul.mubr.bf16.gmra.mrb[0].mxu0 %v121
    %v222 = vpop.f32.mrb[0].mxu0
    %v223 = vadd.f32 %v82, %v222
    %v224 = vpop.f32.mrb[0].mxu0
    %v225 = vadd.f32 %v86, %v224
    %v226 = vpop.f32.mrb[0].mxu0
    %v227 = vadd.f32 %v82, %v226
    %v228 = vpop.f32.mrb[0].mxu0
    %v229 = vadd.f32 %v86, %v228
    %230 = vmatprep.mubr.bf16.mxu0 0
    %231 = vmatmul.mubr.bf16.gmra.mrb[0].mxu0 %v124
    %v232 = vpop.f32.mrb[0].mxu0
    %v233 = vadd.f32 %v82, %v232
    %v234 = vpop.f32.mrb[0].mxu0
    %v235 = vadd.f32 %v86, %v234
    %v236 = vpop.f32.mrb[0].mxu0
    %v237 = vadd.f32 %v82, %v236
    %v238 = vpop.f32.mrb[0].mxu0
    %v239 = vadd.f32 %v86, %v238
    %240 = vmatprep.mubr.bf16.mxu0 0
    %241 = vmatmul.mubr.bf16.gmra.mrb[0].mxu0 %v127
    %v242 = vpop.f32.mrb[0].mxu0
    %v243 = vadd.f32 %v82, %v242
    %v244 = vpop.f32.mrb[0].mxu0
    %v245 = vadd.f32 %v86, %v244
    %v246 = vpop.f32.mrb[0].mxu0
    %v247 = vadd.f32 %v82, %v246
    %v248 = vpop.f32.mrb[0].mxu0
    %v249 = vadd.f32 %v86, %v248
    %250 = vdwg.mxu0
    %v251 = vmax.f32 %v173, 0.0
    %v252 = vmax.f32 %v175, 0.0
    %v253 = vmax.f32 %v177, 0.0
    %v254 = vmax.f32 %v179, 0.0
    %v255 = vmax.f32 %v183, 0.0
    %v256 = vmax.f32 %v185, 0.0
    %v257 = vmax.f32 %v187, 0.0
    %v258 = vmax.f32 %v189, 0.0
    %v259 = vmax.f32 %v193, 0.0
    %v260 = vmax.f32 %v195, 0.0
    %v261 = vmax.f32 %v197, 0.0
    %v262 = vmax.f32 %v199, 0.0
    %v263 = vmax.f32 %v203, 0.0
    %v264 = vmax.f32 %v205, 0.0
    %v265 = vmax.f32 %v207, 0.0
    %v266 = vmax.f32 %v209, 0.0
    %v267 = vmax.f32 %v213, 0.0
    %v268 = vmax.f32 %v215, 0.0
    %v269 = vmax.f32 %v217, 0.0
    %v270 = vmax.f32 %v219, 0.0
    %v271 = vmax.f32 %v223, 0.0
    %v272 = vmax.f32 %v225, 0.0
    %v273 = vmax.f32 %v227, 0.0
    %v274 = vmax.f32 %v229, 0.0
    %v275 = vmax.f32 %v233, 0.0
    %v276 = vmax.f32 %v235, 0.0
    %v277 = vmax.f32 %v237, 0.0
    %v278 = vmax.f32 %v239, 0.0
    %v279 = vmax.f32 %v243, 0.0
    %v280 = vmax.f32 %v245, 0.0
    %v281 = vmax.f32 %v247, 0.0
    %v282 = vmax.f32 %v249, 0.0
    %v283 = vpack.c.bf16 %v253, %v251
    %v284 = vpack.c.bf16 %v254, %v252
    %v285 = vpack.c.bf16 %v257, %v255
    %v286 = vpack.c.bf16 %v258, %v256
    %v287 = vpack.c.bf16 %v261, %v259
    %v288 = vpack.c.bf16 %v262, %v260
    %v289 = vpack.c.bf16 %v265, %v263
    %v290 = vpack.c.bf16 %v266, %v264
    %v291 = vpack.c.bf16 %v269, %v267
    %v292 = vpack.c.bf16 %v270, %v268
    %v293 = vpack.c.bf16 %v273, %v271
    %v294 = vpack.c.bf16 %v274, %v272
    %v295 = vpack.c.bf16 %v277, %v275
    %v296 = vpack.c.bf16 %v278, %v276
    %v297 = vpack.c.bf16 %v281, %v279
    %v298 = vpack.c.bf16 %v282, %v280
    %v299 = vld [vmem:[#allocation3] sm:$0xf]
    %v300 = vld [vmem:[#allocation3 + $0x4] sm:$0xf]
    %v301 = vld [vmem:[#allocation3 + $0x8] sm:$0xf]
    %v302 = vld [vmem:[#allocation3 + $0xc] sm:$0xf]
    %v303 = vld [vmem:[#allocation3 + $0x10] sm:$0xf]
    %v304 = vld [vmem:[#allocation3 + $0x14] sm:$0xf]
    %v305 = vld [vmem:[#allocation3 + $0x18] sm:$0xf]
    %v306 = vld [vmem:[#allocation3 + $0x1c] sm:$0xf]
    %v307 = vld [vmem:[#allocation3 + $0x20] sm:$0xf]
    %v308 = vld [vmem:[#allocation3 + $0x24] sm:$0xf]
    %v309 = vld [vmem:[#allocation3 + $0x28] sm:$0xf]
    %v310 = vld [vmem:[#allocation3 + $0x2c] sm:$0xf]
    %v311 = vld [vmem:[#allocation3 + $0x30] sm:$0xf]
    %v312 = vld [vmem:[#allocation3 + $0x34] sm:$0xf]
    %v313 = vld [vmem:[#allocation3 + $0x38] sm:$0xf]
    %v314 = vld [vmem:[#allocation3 + $0x3c] sm:$0xf]
    %v315 = vld [vmem:[#allocation3 + $0x40] sm:$0xf]
    %v316 = vld [vmem:[#allocation3 + $0x44] sm:$0xf]
    %v317 = vld [vmem:[#allocation3 + $0x48] sm:$0xf]
    %v318 = vld [vmem:[#allocation3 + $0x4c] sm:$0xf]
    %v319 = vld [vmem:[#allocation3 + $0x50] sm:$0xf]
    %v320 = vld [vmem:[#allocation3 + $0x54] sm:$0xf]
    %v321 = vld [vmem:[#allocation3 + $0x58] sm:$0xf]
    %v322 = vld [vmem:[#allocation3 + $0x5c] sm:$0xf]
    %v323 = vld [vmem:[#allocation3 + $0x60] sm:$0xf]
    %v324 = vld [vmem:[#allocation3 + $0x64] sm:$0xf]
    %v325 = vld [vmem:[#allocation3 + $0x68] sm:$0xf]
    %v326 = vld [vmem:[#allocation3 + $0x6c] sm:$0xf]
    %v327 = vld [vmem:[#allocation3 + $0x70] sm:$0xf]
    %v328 = vld [vmem:[#allocation3 + $0x74] sm:$0xf]
    %v329 = vld [vmem:[#allocation3 + $0x78] sm:$0xf]
    %v330 = vld [vmem:[#allocation3 + $0x7c] sm:$0xf]
    %v331 = vld [vmem:[%s4] sm:$0x1]
    %v333 = vlaneseq
    %v334 = vshrl.u32 %v333, 7
    %v335 = vsub.s32 0, %v334
    %v336 = vrot.slane %v331, %v335
    %v370 = vunpack.c.l.b16 %v299
    %v371 = vunpack.c.l.b16 %v300
    %v372 = vunpack.c.l.b16 %v301
    %v373 = vunpack.c.l.b16 %v302
    %v374 = vunpack.c.l.b16 %v303
    %v375 = vunpack.c.l.b16 %v304
    %v376 = vunpack.c.l.b16 %v305
    %v377 = vunpack.c.l.b16 %v306
    %v378 = vunpack.c.l.b16 %v307
    %v379 = vunpack.c.l.b16 %v308
    %v380 = vunpack.c.l.b16 %v309
    %v381 = vunpack.c.l.b16 %v310
    %v382 = vunpack.c.l.b16 %v311
    %v383 = vunpack.c.l.b16 %v312
    %v384 = vunpack.c.l.b16 %v313
    %v385 = vunpack.c.l.b16 %v314
    %v386 = vunpack.c.l.b16 %v315
    %v387 = vunpack.c.l.b16 %v316
    %v388 = vunpack.c.l.b16 %v317
    %v389 = vunpack.c.l.b16 %v318
    %v390 = vunpack.c.l.b16 %v319
    %v391 = vunpack.c.l.b16 %v320
    %v392 = vunpack.c.l.b16 %v321
    %v393 = vunpack.c.l.b16 %v322
    %v394 = vunpack.c.l.b16 %v323
    %v395 = vunpack.c.l.b16 %v324
    %v396 = vunpack.c.l.b16 %v325
    %v397 = vunpack.c.l.b16 %v326
    %v398 = vunpack.c.l.b16 %v327
    %v399 = vunpack.c.l.b16 %v328
    %v400 = vunpack.c.l.b16 %v329
    %v401 = vunpack.c.l.b16 %v330
    %v402 = vpack.c.b16 %v371, %v370
    %v403 = vpack.c.b16 %v373, %v372
    %v404 = vpack.c.b16 %v375, %v374
    %v405 = vpack.c.b16 %v377, %v376
    %v406 = vpack.c.b16 %v379, %v378
    %v407 = vpack.c.b16 %v381, %v380
    %v408 = vpack.c.b16 %v383, %v382
    %v409 = vpack.c.b16 %v385, %v384
    %v410 = vpack.c.b16 %v387, %v386
    %v411 = vpack.c.b16 %v389, %v388
    %v412 = vpack.c.b16 %v391, %v390
    %v413 = vpack.c.b16 %v393, %v392
    %v414 = vpack.c.b16 %v395, %v394
    %v415 = vpack.c.b16 %v397, %v396
    %v416 = vpack.c.b16 %v399, %v398
    %v417 = vpack.c.b16 %v401, %v400
    %434 = vmatprep.subr.bf16.mxu0 0
    %435 = vmatpush1.bf16.msra.mxu0 %v402
    %436 = vmatprep.subr.bf16.mxu0 0
    %437 = vmatpush1.bf16.msra.mxu0 %v403
    %438 = vmatprep.subr.bf16.mxu0 0
    %439 = vmatpush1.bf16.msra.mxu0 %v404
    %440 = vmatprep.subr.bf16.mxu0 0
    %441 = vmatpush1.bf16.msra.mxu0 %v405
    %442 = vmatprep.subr.bf16.mxu0 0
    %443 = vmatpush1.bf16.msra.mxu0 %v406
    %444 = vmatprep.subr.bf16.mxu0 0
    %445 = vmatpush1.bf16.msra.mxu0 %v407
    %446 = vmatprep.subr.bf16.mxu0 0
    %447 = vmatpush1.bf16.msra.mxu0 %v408
    %448 = vmatprep.subr.bf16.mxu0 0
    %449 = vmatpush1.bf16.msra.mxu0 %v409
    %450 = vmatprep.subr.bf16.mxu0 0
    %451 = vmatpush1.bf16.msra.mxu0 %v410
    %452 = vmatprep.subr.bf16.mxu0 0
    %453 = vmatpush1.bf16.msra.mxu0 %v411
    %454 = vmatprep.subr.bf16.mxu0 0
    %455 = vmatpush1.bf16.msra.mxu0 %v412
    %456 = vmatprep.subr.bf16.mxu0 0
    %457 = vmatpush1.bf16.msra.mxu0 %v413
    %458 = vmatprep.subr.bf16.mxu0 0
    %459 = vmatpush1.bf16.msra.mxu0 %v414
    %460 = vmatprep.subr.bf16.mxu0 0
    %461 = vmatpush1.bf16.msra.mxu0 %v415
    %462 = vmatprep.subr.bf16.mxu0 0
    %463 = vmatpush1.bf16.msra.mxu0 %v416
    %464 = vmatprep.subr.bf16.mxu0 0
    %465 = vmatpush1.bf16.msra.mxu0 %v417
    %466 = vmatprep.mubr.bf16.mxu0 %v284
    %467 = vmatmul.mubr.bf16.gmra.mrb[0].mxu0 %v283
    %v468 = vpop.f32.mrb[0].mxu0
    %v469 = vadd.f32 %v336, %v468
    %v470 = vpop.f32.mrb[0].mxu0
    %v471 = vpop.f32.mrb[0].mxu0
    %v472 = vadd.f32 %v336, %v471
    %v473 = vpop.f32.mrb[0].mxu0
    %474 = vmatprep.mubr.bf16.mxu0 %v286
    %475 = vmatmul.mubr.bf16.gmra.mrb[0].mxu0 %v285
    %v476 = vpop.f32.mrb[0].mxu0
    %v477 = vadd.f32 %v336, %v476
    %v478 = vpop.f32.mrb[0].mxu0
    %v479 = vpop.f32.mrb[0].mxu0
    %v480 = vadd.f32 %v336, %v479
    %v481 = vpop.f32.mrb[0].mxu0
    %482 = vmatprep.mubr.bf16.mxu0 %v288
    %483 = vmatmul.mubr.bf16.gmra.mrb[0].mxu0 %v287
    %v484 = vpop.f32.mrb[0].mxu0
    %v485 = vadd.f32 %v336, %v484
    %v486 = vpop.f32.mrb[0].mxu0
    %v487 = vpop.f32.mrb[0].mxu0
    %v488 = vadd.f32 %v336, %v487
    %v489 = vpop.f32.mrb[0].mxu0
    %490 = vmatprep.mubr.bf16.mxu0 %v290
    %491 = vmatmul.mubr.bf16.gmra.mrb[0].mxu0 %v289
    %v492 = vpop.f32.mrb[0].mxu0
    %v493 = vadd.f32 %v336, %v492
    %v494 = vpop.f32.mrb[0].mxu0
    %v495 = vpop.f32.mrb[0].mxu0
    %v496 = vadd.f32 %v336, %v495
    %v497 = vpop.f32.mrb[0].mxu0
    %498 = vmatprep.mubr.bf16.mxu0 %v292
    %499 = vmatmul.mubr.bf16.gmra.mrb[0].mxu0 %v291
    %v500 = vpop.f32.mrb[0].mxu0
    %v501 = vadd.f32 %v336, %v500
    %v502 = vpop.f32.mrb[0].mxu0
    %v503 = vpop.f32.mrb[0].mxu0
    %v504 = vadd.f32 %v336, %v503
    %v505 = vpop.f32.mrb[0].mxu0
    %506 = vmatprep.mubr.bf16.mxu0 %v294
    %507 = vmatmul.mubr.bf16.gmra.mrb[0].mxu0 %v293
    %v508 = vpop.f32.mrb[0].mxu0
    %v509 = vadd.f32 %v336, %v508
    %v510 = vpop.f32.mrb[0].mxu0
    %v511 = vpop.f32.mrb[0].mxu0
    %v512 = vadd.f32 %v336, %v511
    %v513 = vpop.f32.mrb[0].mxu0
    %514 = vmatprep.mubr.bf16.mxu0 %v296
    %515 = vmatmul.mubr.bf16.gmra.mrb[0].mxu0 %v295
    %v516 = vpop.f32.mrb[0].mxu0
    %v517 = vadd.f32 %v336, %v516
    %v518 = vpop.f32.mrb[0].mxu0
    %v519 = vpop.f32.mrb[0].mxu0
    %v520 = vadd.f32 %v336, %v519
    %v521 = vpop.f32.mrb[0].mxu0
    %522 = vmatprep.mubr.bf16.mxu0 %v298
    %523 = vmatmul.mubr.bf16.gmra.mrb[0].mxu0 %v297
    %v524 = vpop.f32.mrb[0].mxu0
    %v525 = vadd.f32 %v336, %v524
    %v526 = vpop.f32.mrb[0].mxu0
    %v527 = vpop.f32.mrb[0].mxu0
    %v528 = vadd.f32 %v336, %v527
    %v529 = vpop.f32.mrb[0].mxu0
    %530 = vdwg.mxu0
    %v531 = vmax.f32 %v469, 0.0
    %v532 = vmax.f32 %v472, 0.0
    %v533 = vmax.f32 %v477, 0.0
    %v534 = vmax.f32 %v480, 0.0
    %v535 = vmax.f32 %v485, 0.0
    %v536 = vmax.f32 %v488, 0.0
    %v537 = vmax.f32 %v493, 0.0
    %v538 = vmax.f32 %v496, 0.0
    %v539 = vmax.f32 %v501, 0.0
    %v540 = vmax.f32 %v504, 0.0
    %v541 = vmax.f32 %v509, 0.0
    %v542 = vmax.f32 %v512, 0.0
    %v543 = vmax.f32 %v517, 0.0
    %v544 = vmax.f32 %v520, 0.0
    %v545 = vmax.f32 %v525, 0.0
    %v546 = vmax.f32 %v528, 0.0
    %v547 = vpack.c.bf16 %v532, %v531
    %v548 = vpack.c.bf16 %v534, %v533
    %v549 = vpack.c.bf16 %v536, %v535
    %v550 = vpack.c.bf16 %v538, %v537
    %v551 = vpack.c.bf16 %v540, %v539
    %v552 = vpack.c.bf16 %v542, %v541
    %v553 = vpack.c.bf16 %v544, %v543
    %v554 = vpack.c.bf16 %v546, %v545
    %v555 = vld [vmem:[%s5] sm:$0xf]
    %v556 = vld [vmem:[%s5 + $0x4] sm:$0xf]
    %v557 = vld [vmem:[%s5 + $0x8] sm:$0xf]
    %v558 = vld [vmem:[%s5 + $0xc] sm:$0xf]
    %v559 = vld [vmem:[%s5 + $0x10] sm:$0xf]
    %v560 = vld [vmem:[%s5 + $0x14] sm:$0xf]
    %v561 = vld [vmem:[%s5 + $0x18] sm:$0xf]
    %v562 = vld [vmem:[%s5 + $0x1c] sm:$0xf]
    %v563 = vld [vmem:[%s5 + $0x20] sm:$0xf]
    %v564 = vld [vmem:[%s5 + $0x24] sm:$0xf]
    %v565 = vld [vmem:[%s5 + $0x28] sm:$0xf]
    %v566 = vld [vmem:[%s5 + $0x2c] sm:$0xf]
    %v567 = vld [vmem:[%s5 + $0x30] sm:$0xf]
    %v568 = vld [vmem:[%s5 + $0x34] sm:$0xf]
    %v569 = vld [vmem:[%s5 + $0x38] sm:$0xf]
    %v570 = vld [vmem:[%s5 + $0x3c] sm:$0xf]
    %v571 = vld [vmem:[%s6] sm:$0x1]
    %v573 = vlaneseq
    %v574 = vshrl.u32 %v573, 7
    %v575 = vsub.s32 0, %v574
    %v576 = vrot.slane %v571, %v575
    %v594 = vunpack.c.l.b16 %v555
    %v595 = vunpack.c.l.b16 %v556
    %v596 = vunpack.c.l.b16 %v557
    %v597 = vunpack.c.l.b16 %v558
    %v598 = vunpack.c.l.b16 %v559
    %v599 = vunpack.c.l.b16 %v560
    %v600 = vunpack.c.l.b16 %v561
    %v601 = vunpack.c.l.b16 %v562
    %v602 = vunpack.c.l.b16 %v563
    %v603 = vunpack.c.l.b16 %v564
    %v604 = vunpack.c.l.b16 %v565
    %v605 = vunpack.c.l.b16 %v566
    %v606 = vunpack.c.l.b16 %v567
    %v607 = vunpack.c.l.b16 %v568
    %v608 = vunpack.c.l.b16 %v569
    %v609 = vunpack.c.l.b16 %v570
    %v610 = vpack.c.b16 %v595, %v594
    %v611 = vpack.c.b16 %v597, %v596
    %v612 = vpack.c.b16 %v599, %v598
    %v613 = vpack.c.b16 %v601, %v600
    %v614 = vpack.c.b16 %v603, %v602
    %v615 = vpack.c.b16 %v605, %v604
    %v616 = vpack.c.b16 %v607, %v606
    %v617 = vpack.c.b16 %v609, %v608
    %626 = vmatprep.subr.bf16.mxu0 0
    %627 = vmatpush1.bf16.msra.mxu0 %v610
    %628 = vmatprep.subr.bf16.mxu0 0
    %629 = vmatpush1.bf16.msra.mxu0 %v611
    %630 = vmatprep.subr.bf16.mxu0 0
    %631 = vmatpush1.bf16.msra.mxu0 %v612
    %632 = vmatprep.subr.bf16.mxu0 0
    %633 = vmatpush1.bf16.msra.mxu0 %v613
    %634 = vmatprep.subr.bf16.mxu0 0
    %635 = vmatpush1.bf16.msra.mxu0 %v614
    %636 = vmatprep.subr.bf16.mxu0 0
    %637 = vmatpush1.bf16.msra.mxu0 %v615
    %638 = vmatprep.subr.bf16.mxu0 0
    %639 = vmatpush1.bf16.msra.mxu0 %v616
    %640 = vmatprep.subr.bf16.mxu0 0
    %641 = vmatpush1.bf16.msra.mxu0 %v617
    %642 = vmatprep.subr.bf16.mxu0 0
    %643 = vmatpush1.bf16.msra.mxu0 0
    %644 = vmatprep.subr.bf16.mxu0 0
    %645 = vmatpush1.bf16.msra.mxu0 0
    %646 = vmatprep.subr.bf16.mxu0 0
    %647 = vmatpush1.bf16.msra.mxu0 0
    %648 = vmatprep.subr.bf16.mxu0 0
    %649 = vmatpush1.bf16.msra.mxu0 0
    %650 = vmatprep.subr.bf16.mxu0 0
    %651 = vmatpush1.bf16.msra.mxu0 0
    %652 = vmatprep.subr.bf16.mxu0 0
    %653 = vmatpush1.bf16.msra.mxu0 0
    %654 = vmatprep.subr.bf16.mxu0 0
    %655 = vmatpush1.bf16.msra.mxu0 0
    %656 = vmatprep.subr.bf16.mxu0 0
    %657 = vmatpush1.bf16.msra.mxu0 0
    %658 = vmatprep.mubr.bf16.mxu0 0
    %659 = vmatmul.mubr.bf16.gmra.mrb[0].mxu0 %v547
    %v660 = vpop.f32.mrb[0].mxu0
    %v661 = vadd.f32 %v576, %v660
    %v662 = vpop.f32.mrb[0].mxu0
    %v663 = vpop.f32.mrb[0].mxu0
    %v664 = vadd.f32 %v576, %v663
    %v665 = vpop.f32.mrb[0].mxu0
    %666 = vmatprep.mubr.bf16.mxu0 0
    %667 = vmatmul.mubr.bf16.gmra.mrb[0].mxu0 %v548
    %v668 = vpop.f32.mrb[0].mxu0
    %v669 = vadd.f32 %v576, %v668
    %v670 = vpop.f32.mrb[0].mxu0
    %v671 = vpop.f32.mrb[0].mxu0
    %v672 = vadd.f32 %v576, %v671
    %v673 = vpop.f32.mrb[0].mxu0
    %674 = vmatprep.mubr.bf16.mxu0 0
    %675 = vmatmul.mubr.bf16.gmra.mrb[0].mxu0 %v549
    %v676 = vpop.f32.mrb[0].mxu0
    %v677 = vadd.f32 %v576, %v676
    %v678 = vpop.f32.mrb[0].mxu0
    %v679 = vpop.f32.mrb[0].mxu0
    %v680 = vadd.f32 %v576, %v679
    %v681 = vpop.f32.mrb[0].mxu0
    %682 = vmatprep.mubr.bf16.mxu0 0
    %683 = vmatmul.mubr.bf16.gmra.mrb[0].mxu0 %v550
    %v684 = vpop.f32.mrb[0].mxu0
    %v685 = vadd.f32 %v576, %v684
    %v686 = vpop.f32.mrb[0].mxu0
    %v687 = vpop.f32.mrb[0].mxu0
    %v688 = vadd.f32 %v576, %v687
    %v689 = vpop.f32.mrb[0].mxu0
    %690 = vmatprep.mubr.bf16.mxu0 0
    %691 = vmatmul.mubr.bf16.gmra.mrb[0].mxu0 %v551
    %v692 = vpop.f32.mrb[0].mxu0
    %v693 = vadd.f32 %v576, %v692
    %v694 = vpop.f32.mrb[0].mxu0
    %v695 = vpop.f32.mrb[0].mxu0
    %v696 = vadd.f32 %v576, %v695
    %v697 = vpop.f32.mrb[0].mxu0
    %698 = vmatprep.mubr.bf16.mxu0 0
    %699 = vmatmul.mubr.bf16.gmra.mrb[0].mxu0 %v552
    %v700 = vpop.f32.mrb[0].mxu0
    %v701 = vadd.f32 %v576, %v700
    %v702 = vpop.f32.mrb[0].mxu0
    %v703 = vpop.f32.mrb[0].mxu0
    %v704 = vadd.f32 %v576, %v703
    %v705 = vpop.f32.mrb[0].mxu0
    %706 = vmatprep.mubr.bf16.mxu0 0
    %707 = vmatmul.mubr.bf16.gmra.mrb[0].mxu0 %v553
    %v708 = vpop.f32.mrb[0].mxu0
    %v709 = vadd.f32 %v576, %v708
    %v710 = vpop.f32.mrb[0].mxu0
    %v711 = vpop.f32.mrb[0].mxu0
    %v712 = vadd.f32 %v576, %v711
    %v713 = vpop.f32.mrb[0].mxu0
    %714 = vmatprep.mubr.bf16.mxu0 0
    %715 = vmatmul.mubr.bf16.gmra.mrb[0].mxu0 %v554
    %v716 = vpop.f32.mrb[0].mxu0
    %v717 = vadd.f32 %v576, %v716
    %v718 = vpop.f32.mrb[0].mxu0
    %v719 = vpop.f32.mrb[0].mxu0
    %v720 = vadd.f32 %v576, %v719
    %v721 = vpop.f32.mrb[0].mxu0
    %722 = vdwg.mxu0
    %v723 = vmax.f32 %v661, 0.0
    %v724 = vmax.f32 %v664, 0.0
    %v725 = vmax.f32 %v669, 0.0
    %v726 = vmax.f32 %v672, 0.0
    %v727 = vmax.f32 %v677, 0.0
    %v728 = vmax.f32 %v680, 0.0
    %v729 = vmax.f32 %v685, 0.0
    %v730 = vmax.f32 %v688, 0.0
    %v731 = vmax.f32 %v693, 0.0
    %v732 = vmax.f32 %v696, 0.0
    %v733 = vmax.f32 %v701, 0.0
    %v734 = vmax.f32 %v704, 0.0
    %v735 = vmax.f32 %v709, 0.0
    %v736 = vmax.f32 %v712, 0.0
    %v737 = vmax.f32 %v717, 0.0
    %v738 = vmax.f32 %v720, 0.0
    %v739 = vpack.c.bf16 %v724, %v723
    %v740 = vpack.c.bf16 %v726, %v725
    %v741 = vpack.c.bf16 %v728, %v727
    %v742 = vpack.c.bf16 %v730, %v729
    %v743 = vpack.c.bf16 %v732, %v731
    %v744 = vpack.c.bf16 %v734, %v733
    %v745 = vpack.c.bf16 %v736, %v735
    %v746 = vpack.c.bf16 %v738, %v737
    %v747 = vld [vmem:[%s7] sm:$0xf]
    %vm748 = vcmask 523264
    %v750 = vsel %vm748, %v747, 0
    %v753 = vsel %vm748, %v739, 0
    %v756 = vsel %vm748, %v740, 0
    %v759 = vsel %vm748, %v741, 0
    %v762 = vsel %vm748, %v742, 0
    %v765 = vsel %vm748, %v743, 0
    %v768 = vsel %vm748, %v744, 0
    %v771 = vsel %vm748, %v745, 0
    %v774 = vsel %vm748, %v746, 0
    %776 = vmatprep.subr.bf16.mxu0 0
    %777 = vmatpush1.bf16.xpose.msra.mxu0 %v753
    %778 = vmatprep.subr.bf16.mxu0 0
    %779 = vmatpush1.bf16.xpose.msra.mxu0 %v756
    %780 = vmatprep.subr.bf16.mxu0 0
    %781 = vmatpush1.bf16.xpose.msra.mxu0 %v759
    %782 = vmatprep.subr.bf16.mxu0 0
    %783 = vmatpush1.bf16.xpose.msra.mxu0 %v762
    %784 = vmatprep.subr.bf16.mxu0 0
    %785 = vmatpush1.bf16.xpose.msra.mxu0 %v765
    %786 = vmatprep.subr.bf16.mxu0 0
    %787 = vmatpush1.bf16.xpose.msra.mxu0 %v768
    %788 = vmatprep.subr.bf16.mxu0 0
    %789 = vmatpush1.bf16.xpose.msra.mxu0 %v771
    %790 = vmatprep.subr.bf16.mxu0 0
    %791 = vmatpush1.bf16.xpose.msra.mxu0 %v774
    %792 = vmatprep.subr.bf16.mxu0 0
    %793 = vmatpush1.bf16.xpose.msra.mxu0 0
    %794 = vmatprep.subr.bf16.mxu0 0
    %795 = vmatpush1.bf16.xpose.msra.mxu0 0
    %796 = vmatprep.subr.bf16.mxu0 0
    %797 = vmatpush1.bf16.xpose.msra.mxu0 0
    %798 = vmatprep.subr.bf16.mxu0 0
    %799 = vmatpush1.bf16.xpose.msra.mxu0 0
    %800 = vmatprep.subr.bf16.mxu0 0
    %801 = vmatpush1.bf16.xpose.msra.mxu0 0
    %802 = vmatprep.subr.bf16.mxu0 0
    %803 = vmatpush1.bf16.xpose.msra.mxu0 0
    %804 = vmatprep.subr.bf16.mxu0 0
    %805 = vmatpush1.bf16.xpose.msra.mxu0 0
    %806 = vmatprep.subr.bf16.mxu0 0
    %807 = vmatpush1.bf16.xpose.msra.mxu0 0
    %808 = vmatprep.mubr.bf16.mxu0 0
    %809 = vmatmul.mubr.bf16.gmra.mrb[0].mxu0 %v750
    %v810 = vpop.f32.mrb[0].mxu0
    %v811 = vadd.f32 0.0, %v810
    %v812 = vpop.f32.mrb[0].mxu0
    %v813 = vpop.f32.mrb[0].mxu0
    %v814 = vpop.f32.mrb[0].mxu0
    %815 = vdwg.mxu0
    %v816 = vld [vmem:[#allocation2] sm:$0x1]
    %818 = vset.pattern.permute.xlu0 0
    %819 = vperm.xlu0 %818, %v816
    %v820 = vpop.permute.xlu0 %819
    %v822 = vlaneseq
    %v823 = vshrl.u32 %v822, 7
    %v824 = vsub.s32 0, %v823
    %v825 = vrot.slane %v820, %v824
    %v826 = vadd.f32 %v811, %v825
    %v827 = vmax.f32 %v826, 0.0
    %v828 = vand.u32 2147483647, %v826
    %v829 = vsub.f32 0.0, %v828
    %v830 = vmul.f32 %v829, 1.442695
    %v831 = vpow.pop %v830
    %v832 = vadd.f32 %v831, 1.0
    %v833 = vlog2.pop %v832
    %v834 = vmul.f32 %v833, 0.6931472
    %v835 = vmul.f32 -0.5, %v831
    %v836 = vadd.f32 %v835, 1.0
    %v837 = vmul.f32 %v836, %v831
    %v838 = vand.u32 2147483647, %v831
    %vm839 = vcmp.lt.f32.partialorder %v838, 0.0004427343
    %v840 = vsel %vm839, %v837, %v834
    %v841 = vadd.f32 %v827, %v840
    %v842 = vadd.f32 %v841, 25.0
    %v843 = vmax.f32 %v842, 5.0
    %v844 = vmin.f32 %v843, 100.0
    %845 = vst [vmem:[#allocation6] sm:$0x1] %v844
    // Predicated region
    $region42: #{tpu_custom_call.1} parent=1 // pred_check
      _
    $region43: #{tpu_custom_call.1} parent=1 // pred_check_branch
      %847 = sbr.rel (0) target = $region45
    $region44: #{tpu_custom_call.1} parent=1 // pred_region
      %s849 = ssub.s32 16, 16
      %850 = vsyncadd [#allocation5], %s849
      %s852 = sshll.u32 [#allocation6], 4
      %s853 = int_to_ptr.vmem [resolvable:$true] %s852
      %855 = dma.vmem_to_hbm [thread:$0]  %s853, 16, %s9, [#allocation5]
    $region45: #{tpu_custom_call.1} parent=1 // pred_fallthru
      _
    // Predicated region
    $region46: #{tpu_custom_call.1} parent=1 // pred_check
      _
    $region47: #{tpu_custom_call.1} parent=1 // pred_check_branch
      %857 = sbr.rel (0) target = $region49
    $region48: #{tpu_custom_call.1} parent=1 // pred_region
      %858 = dma.done [#allocation5], 16
    $region49: #{tpu_custom_call.1} parent=1 // pred_fallthru
      _
    %859 = vsyncpa [#allocation4], 1
    %860 = vsyncpa [#allocation5], 1

</llo_original>
